<compile_context>
chip_gen: v6e
topology: v6e:2x2x1
jax: 0.10.0
libtpu: 0.0.40
codegen_flags: <defaults>
</compile_context>

<pallas_src>
import math

import jax
import jax.numpy as jnp
from jax.experimental import pallas as pl
from jax.experimental.pallas import tpu as pltpu


def _round_up(a, b):
    return (a + b - 1) // b * b


def _epilogue(acc, b_row, *, act, act_gain, out_gain):
    """Fused bias / LeakyReLU / gain epilogue on the f32 accumulator."""
    if b_row is not None:
        acc = acc + b_row
    if act:
        # torch.nn.LeakyReLU default negative_slope = 0.01
        acc = jnp.where(acc >= 0, acc, jnp.float32(0.01) * acc)
        acc = acc * jnp.float32(act_gain)
    else:
        acc = acc * jnp.float32(out_gain)
    return acc


def _make_fused_kernel(*, act, act_gain, out_gain, use_bias):
    """Resident-weight path: single K step, no accumulator scratch."""

    def kernel(x_ref, w_ref, *refs):
        if use_bias:
            b_ref, o_ref = refs
            b_row = b_ref[...].astype(jnp.float32)
        else:
            (o_ref,) = refs
            b_row = None
        acc = jnp.dot(x_ref[...], w_ref[...], preferred_element_type=jnp.float32)
        y = _epilogue(acc, b_row, act=act, act_gain=act_gain, out_gain=out_gain)
        o_ref[...] = y.astype(o_ref.dtype)

    return kernel


def _make_acc_kernel(*, act, act_gain, out_gain, use_bias):
    """Fallback path: tiled K reduction with f32 VMEM accumulator."""

    def kernel(x_ref, w_ref, *refs):
        if use_bias:
            b_ref, o_ref, acc_ref = refs
        else:
            b_ref = None
            o_ref, acc_ref = refs

        @pl.when(pl.program_id(2) == 0)
        def _init():
            acc_ref[...] = jnp.zeros_like(acc_ref)

        acc_ref[...] += jnp.dot(
            x_ref[...], w_ref[...], preferred_element_type=jnp.float32
        )

        @pl.when(pl.program_id(2) == pl.num_programs(2) - 1)
        def _finalize():
            b_row = b_ref[...].astype(jnp.float32) if use_bias else None
            y = _epilogue(acc_ref[...], b_row, act=act,
                          act_gain=act_gain, out_gain=out_gain)
            o_ref[...] = y.astype(o_ref.dtype)

    return kernel


def conv2d_layer(x, w, b=None, *, stride=1, padding="same",
                 activation=False, gain=1.0):
    """Pallas implementation of Conv2DLayer.forward.

    x: (N, C, H, W) float32
    w: (OUT, C, k, k) float32
    b: (OUT,) float32 or None
    """
    N, C, H, W = x.shape
    OUT, C_w, kh, kw = w.shape
    assert C == C_w and kh == kw, "weight shape must be (OUT, C, k, k)"
    k = kh
    w_gain = 1.0 / math.sqrt(C * k * k)

    # ---- padding / output geometry (matches torch conv2d) ----
    if padding == "same":
        if stride != 1:
            raise ValueError("padding='same' requires stride=1 (as in torch)")
        # torch 'same': left/top = (k-1)//2, right/bottom = k-1 - (k-1)//2 = k//2
        pad_t = pad_l = (k - 1) // 2
        pad_b = pad_r = k // 2
    elif padding == "valid":
        pad_t = pad_b = pad_l = pad_r = 0
    else:
        p = int(padding)
        pad_t = pad_b = pad_l = pad_r = p

    H_out = (H + pad_t + pad_b - k) // stride + 1
    W_out = (W + pad_l + pad_r - k) // stride + 1
    x_pad = jnp.pad(x, ((0, 0), (0, 0), (pad_t, pad_b), (pad_l, pad_r)))

    M = N * H_out * W_out
    K = C * k * k

    # ---- im2col (layout plumbing in the wrapper; compute stays in-kernel) ----
    if k == 1:
        # 1x1 conv: no patch extraction needed, just NCHW -> (M, C).
        win = x_pad[:, :, :stride * (H_out - 1) + 1:stride,
                    :stride * (W_out - 1) + 1:stride]
        patches = win.transpose(0, 2, 3, 1).reshape(M, K)
    else:
        # TODO(synk): fold the k*k spatial shifts into in-kernel DMA windows
        # (NHWC) to avoid materializing a k^2-larger patches array in HBM for
        # large feature maps; requires element-offset windowing / manual DMA.
        cols = []
        for dy in range(k):
            for dx in range(k):
                cols.append(
                    x_pad[:, :,
                          dy:dy + stride * (H_out - 1) + 1:stride,
                          dx:dx + stride * (W_out - 1) + 1:stride]
                )
        # (k*k, N, C, Ho, Wo) -> (N, Ho, Wo, C, k*k) -> (M, K); col order (c, dy, dx)
        patches = jnp.stack(cols, axis=0).transpose(1, 3, 4, 2, 0).reshape(M, K)

    # Fold the equalized-LR gain into the weight BEFORE the bf16 cast — same
    # ordering as PyTorch (conv2d(x, w * w_gain, ...)); removes one VPU pass
    # over every output tile.
    w_mat = (w.reshape(OUT, K) * jnp.float32(w_gain)).T     # (K, OUT)

    use_bias = b is not None
    act = bool(activation)
    act_gain = math.sqrt(2.0) * gain
    out_gain = gain

    # ---- tiling ----
    LANE = 128
    N_pad = _round_up(OUT, LANE)
    K_pad = _round_up(K, LANE)

    # Conservative VMEM budget so the same plan fits v7x (64 MiB physical) as
    # well as v5e/v6e (128 MiB).
    VMEM_BUDGET = 40 * 1024 * 1024
    w_bytes = K_pad * N_pad * 2                      # one bf16 weight buffer
    resident = (2 * w_bytes) <= 16 * 1024 * 1024     # double-buffered weight cap

    if resident:
        # Whole padded weight resident in VMEM; only the patches matrix streams.
        tn, tk = N_pad, K_pad
        # bytes per tm row: A double buffer (2*K_pad*2B) + out double buffer (2*N_pad*2B)
        per_row = 4 * (K_pad + N_pad)
        avail = VMEM_BUDGET - 2 * w_bytes - 8 * N_pad
        tm = max(128, min(1024, (avail // per_row) // 128 * 128))
        tm = min(tm, _round_up(M, 128))
        M_pad = _round_up(M, tm)
        n_m_blocks = M_pad // tm
        # Keep the M-block count even so both v7x TensorCores get balanced work.
        if n_m_blocks > 1 and n_m_blocks % 2 == 1 and tm >= 256:
            tm //= 2
            M_pad = _round_up(M, tm)
        req_bytes = 2 * w_bytes + 4 * tm * K_pad + 4 * tm * N_pad + 8 * N_pad
    else:
        # Weight too large to hold resident: tiled 3-D grid, K axis last.
        tm = min(512, _round_up(M, 128))
        tn = min(256, N_pad)
        tk = min(512, K_pad)
        M_pad = _round_up(M, tm)
        N_pad = _round_up(OUT, tn)
        K_pad = _round_up(K, tk)
        req_bytes = 4 * tm * tk + 4 * tk * tn + 4 * tm * tn + tm * tn * 4 + 8 * tn

    vmem_limit = int(min(48 * 1024 * 1024,
                         max(32 * 1024 * 1024, req_bytes + 4 * 1024 * 1024)))

    # bf16 into the MXU (f32 accumulate). Zero-padded K contributes nothing.
    x_p = jnp.pad(patches.astype(jnp.bfloat16), ((0, M_pad - M), (0, K_pad - K)))
    w_p = jnp.pad(w_mat.astype(jnp.bfloat16), ((0, K_pad - K), (0, N_pad - OUT)))

    args = [x_p, w_p]
    bias_bytes = 0
    if use_bias:
        b_p = jnp.pad(b.astype(jnp.float32).reshape(1, OUT),
                      ((0, 0), (0, N_pad - OUT)))
        bias_bytes = int(b_p.size) * 4

    if resident:
        grid = (M_pad // tm,)
        in_specs = [
            pl.BlockSpec((tm, tk), lambda i: (i, 0)),      # patches: streams once
            pl.BlockSpec((tk, tn), lambda i: (0, 0)),      # weight: resident, 1 DMA
        ]
        if use_bias:
            args.append(b_p)
            in_specs.append(pl.BlockSpec((1, tn), lambda i: (0, 0)))
        out_spec = pl.BlockSpec((tm, tn), lambda i: (i, 0))
        scratch_shapes = []
        dims = ("parallel",)     # M blocks shard across TCs on v7x megacore
        kernel = _make_fused_kernel(act=act, act_gain=act_gain,
                                    out_gain=out_gain, use_bias=use_bias)
        bytes_accessed = (int(x_p.size) * 2 + int(w_p.size) * 2
                          + bias_bytes + M_pad * N_pad * 2)
    else:
        grid = (M_pad // tm, N_pad // tn, K_pad // tk)
        in_specs = [
            pl.BlockSpec((tm, tk), lambda i, j, kk: (i, kk)),
            pl.BlockSpec((tk, tn), lambda i, j, kk: (kk, j)),
        ]
        if use_bias:
            args.append(b_p)
            in_specs.append(pl.BlockSpec((1, tn), lambda i, j, kk: (0, j)))
        out_spec = pl.BlockSpec((tm, tn), lambda i, j, kk: (i, j))
        scratch_shapes = [pltpu.VMEM((tm, tn), jnp.float32)]
        dims = ("parallel", "parallel", "arbitrary")
        kernel = _make_acc_kernel(act=act, act_gain=act_gain,
                                  out_gain=out_gain, use_bias=use_bias)
        # account for per-tile re-reads: A read N_pad/tn times, B read M_pad/tm times
        bytes_accessed = (int(x_p.size) * 2 * (N_pad // tn)
                          + int(w_p.size) * 2 * (M_pad // tm)
                          + bias_bytes + M_pad * N_pad * 2)

    cost = pl.CostEstimate(
        flops=2 * M_pad * K_pad * N_pad,
        transcendentals=0,
        bytes_accessed=int(bytes_accessed),
    )

    out = pl.pallas_call(
        kernel,
        # bf16 output halves kernel writeback; cast back in the wrapper.
        out_shape=jax.ShapeDtypeStruct((M_pad, N_pad), jnp.bfloat16),
        grid_spec=pltpu.PrefetchScalarGridSpec(
            num_scalar_prefetch=0,
            grid=grid,
            in_specs=in_specs,
            out_specs=out_spec,
            scratch_shapes=scratch_shapes,
        ),
        compiler_params=pltpu.CompilerParams(
            dimension_semantics=dims,
            vmem_limit_bytes=vmem_limit,
        ),
        cost_estimate=cost,
    )(*args)

    # Un-pad, back to NCHW, and restore the caller dtype.
    y = out[:M, :OUT].reshape(N, H_out, W_out, OUT).transpose(0, 3, 1, 2)
    return y.astype(x.dtype)


def reference_forward(x, w, b=None, *, stride=1, padding="same",
                      activation=False, gain=1.0):
    """Plain-JAX (f32) reference mirroring the PyTorch module."""
    OUT, C, k, _ = w.shape
    w_gain = 1.0 / math.sqrt(C * k * k)
    if padding == "same":
        pads = (((k - 1) // 2, k // 2), ((k - 1) // 2, k // 2))
    elif padding == "valid":
        pads = ((0, 0), (0, 0))
    else:
        p = int(padding)
        pads = ((p, p), (p, p))
    y = jax.lax.conv_general_dilated(
        x, w * w_gain, window_strides=(stride, stride), padding=pads,
        dimension_numbers=("NCHW", "OIHW", "NCHW"))
    if b is not None:
        y = y + b.reshape(1, -1, 1, 1)
    if activation:
        y = jnp.where(y >= 0, y, 0.01 * y) * (math.sqrt(2.0) * gain)
    else:
        y = y * gain
    return y


if __name__ == "__main__":
    key = jax.random.PRNGKey(0)
    k_x, k_w1, k_w2, k_w3 = jax.random.split(key, 4)

    batch, in_ch, out_ch, spatial = 2, 4, 8, 16
    x = jax.random.normal(k_x, (batch, in_ch, spatial, spatial), dtype=jnp.float32)

    # Case 1: 3x3 conv, 'same' padding, bias, LeakyReLU activation, gain=1.0
    w1 = jax.random.normal(k_w1, (out_ch, in_ch, 3, 3), dtype=jnp.float32)
    b1 = jnp.full((out_ch,), 0.1, dtype=jnp.float32)   # bias_init = 0.1
    y1 = jax.block_until_ready(
        conv2d_layer(x, w1, b1, stride=1, padding="same",
                     activation=True, gain=1.0))
    y1_ref = reference_forward(x, w1, b1, stride=1, padding="same",
                               activation=True, gain=1.0)
    assert y1.shape == (batch, out_ch, spatial, spatial)
    # bf16 MXU inputs + bf16 writeback (f32 accumulate) -> loosened tolerance.
    assert jnp.allclose(y1, y1_ref, atol=5e-2, rtol=5e-2), float(
        jnp.max(jnp.abs(y1 - y1_ref)))

    # Case 2: 1x1 conv, no bias, no activation, gain=0.7 (fast k==1 path)
    w2 = jax.random.normal(k_w2, (out_ch, in_ch, 1, 1), dtype=jnp.float32)
    y2 = jax.block_until_ready(
        conv2d_layer(x, w2, None, stride=1, padding="same",
                     activation=False, gain=0.7))
    y2_ref = reference_forward(x, w2, None, stride=1, padding="same",
                               activation=False, gain=0.7)
    assert y2.shape == (batch, out_ch, spatial, spatial)
    assert jnp.allclose(y2, y2_ref, atol=5e-2, rtol=5e-2), float(
        jnp.max(jnp.abs(y2 - y2_ref)))

    # Case 3: 3x3 conv, stride=2, padding=1, bias, no activation
    w3 = jax.random.normal(k_w3, (out_ch, in_ch, 3, 3), dtype=jnp.float32)
    b3 = jnp.zeros((out_ch,), dtype=jnp.float32)
    y3 = jax.block_until_ready(
        conv2d_layer(x, w3, b3, stride=2, padding=1,
                     activation=False, gain=1.0))
    y3_ref = reference_forward(x, w3, b3, stride=2, padding=1,
                               activation=False, gain=1.0)
    assert y3.shape == (batch, out_ch, spatial // 2, spatial // 2)
    assert jnp.allclose(y3, y3_ref, atol=5e-2, rtol=5e-2), float(
        jnp.max(jnp.abs(y3 - y3_ref)))

    print("KERNEL_OK")
</pallas_src>

<mosaic_0001>
module attributes {stable_mosaic.version = 11 : i64} {
  func.func @kernel(%arg0: i32, %arg1: memref<512x128xbf16, #tpu.memory_space<vmem>>, %arg2: memref<128x128xbf16, #tpu.memory_space<vmem>>, %arg3: memref<1x128xf32, #tpu.memory_space<vmem>>, %arg4: memref<512x128xbf16, #tpu.memory_space<vmem>>) attributes {dimension_semantics = [#tpu.dimension_semantics<parallel>], iteration_bounds = array<i64: 1>, scalar_prefetch = 0 : i64, scratch_operands = 0 : i64, tpu.core_type = #tpu.core_type<tc>, window_params = [{transform_indices = @transform_0, window_bounds = array<i64: 512, 128>}, {pipeline_mode = #tpu.pipeline_mode<synchronous>, transform_indices = @transform_1, window_bounds = array<i64: 128, 128>}, {pipeline_mode = #tpu.pipeline_mode<synchronous>, transform_indices = @transform_2, window_bounds = array<i64: 1, 128>}, {transform_indices = @transform_3, window_bounds = array<i64: 512, 128>}]} {
    %c0 = arith.constant 0 : index
    %c0_0 = arith.constant 0 : index
    %0 = vector.load %arg3[%c0, %c0_0] : memref<1x128xf32, #tpu.memory_space<vmem>>, vector<1x128xf32>
    %c0_1 = arith.constant 0 : index
    %c0_2 = arith.constant 0 : index
    %1 = vector.load %arg1[%c0_1, %c0_2] : memref<512x128xbf16, #tpu.memory_space<vmem>>, vector<512x128xbf16>
    %c0_3 = arith.constant 0 : index
    %c0_4 = arith.constant 0 : index
    %2 = vector.load %arg2[%c0_3, %c0_4] : memref<128x128xbf16, #tpu.memory_space<vmem>>, vector<128x128xbf16>
    %cst = arith.constant dense<0.000000e+00> : vector<512x128xf32>
    %3 = tpu.matmul %1, %2, %cst {dimension_numbers = #tpu.dot_dimension_numbers<[1], [0], [0], [1], [0, 0, 1, 1], [], []>} : vector<512x128xbf16>, vector<128x128xbf16>, vector<512x128xf32> -> vector<512x128xf32>
    %4 = vector.broadcast %0 : vector<1x128xf32> to vector<512x128xf32>
    %5 = arith.addf %3, %4 : vector<512x128xf32>
    %cst_5 = arith.constant 0.000000e+00 : f32
    %6 = vector.broadcast %cst_5 : f32 to vector<512x128xf32>
    %7 = arith.cmpf oge, %5, %6 : vector<512x128xf32>
    %cst_6 = arith.constant 0.00999999977 : f32
    %8 = vector.broadcast %cst_6 : f32 to vector<512x128xf32>
    %9 = arith.mulf %8, %5 : vector<512x128xf32>
    %10 = arith.select %7, %5, %9 : vector<512x128xi1>, vector<512x128xf32>
    %cst_7 = arith.constant 1.41421354 : f32
    %11 = vector.broadcast %cst_7 : f32 to vector<512x128xf32>
    %12 = arith.mulf %10, %11 : vector<512x128xf32>
    %13 = arith.truncf %12 : vector<512x128xf32> to vector<512x128xbf16>
    %c0_8 = arith.constant 0 : index
    %c0_9 = arith.constant 0 : index
    %14 = vector.load %arg4[%c0_8, %c0_9] : memref<512x128xbf16, #tpu.memory_space<vmem>>, vector<512x128xbf16>
    tpu.vector_store %arg4[%c0_8, %c0_9], %13 {strides = array<i32>} : memref<512x128xbf16, #tpu.memory_space<vmem>>, vector<512x128xbf16>,
    return
  }
  func.func @transform_0(%arg0: i32) -> (i32, i32) {
    %c0_i32 = arith.constant 0 : i32
    %c0_i32_0 = arith.constant 0 : i32
    return %arg0, %c0_i32 : i32, i32
  }
  func.func @transform_1(%arg0: i32) -> (i32, i32) {
    %c0_i32 = arith.constant 0 : i32
    %c0_i32_0 = arith.constant 0 : i32
    %c0_i32_1 = arith.constant 0 : i32
    return %c0_i32, %c0_i32_0 : i32, i32
  }
  func.func @transform_2(%arg0: i32) -> (i32, i32) {
    %c0_i32 = arith.constant 0 : i32
    %c0_i32_0 = arith.constant 0 : i32
    %c0_i32_1 = arith.constant 0 : i32
    return %c0_i32, %c0_i32_0 : i32, i32
  }
  func.func @transform_3(%arg0: i32) -> (i32, i32) {
    %c0_i32 = arith.constant 0 : i32
    %c0_i32_0 = arith.constant 0 : i32
    return %arg0, %c0_i32 : i32, i32
  }
}

</mosaic_0001>

<llo_original>
// kernel: tpu_custom_call.1
$region0: #{tpu_custom_call.1}
  #allocation0 [shape = 'u32[]', space=smem, size = 0x4, offset = 0x4, fixed_abs, tag = 'smem constant byte address 0x4 - core index']
  #allocation1 [shape = 'u32[144,128]{1,0:T(1,128)}', space=vmem, size = 0x12000, scoped, tag = 'internal scratch']
  %s0 = inlined_call_operand.hbm [shape: bf16[512,128], index: 0, kind: input, shape index: {}]
  %s1 = inlined_call_operand.hbm [shape: bf16[128,128], index: 1, kind: input, shape index: {}]
  %s2 = inlined_call_operand.vmem [shape: f32[1,128], index: 2, kind: input, shape index: {}]
  %s3 = inlined_call_operand.hbm [shape: bf16[512,128], index: 3, kind: output, shape index: {}]
  %s4 = sld [smem:[#allocation0]]
  $region30: #{tpu_custom_call.1} parent=0
    _
  %s6 = ssub.s32 1, %s4
  %s7 = scalar_select 0, %s6, %s4
  $region1: #{tpu_custom_call.1} parent=0
    #allocation2 [shape = 'u8[131072]{0}', space=vmem, size = 0x20000, scoped, tag = 'input window, operand 0, single buffered']
    #allocation3 [shape = 's32[1]{0}', space=sflag, size = 0x4, scoped, tag = 'scoped memory for tpu_custom_call.1']
    #allocation4 [shape = 's32[1]{0}', space=sflag, size = 0x4, scoped, tag = 'scoped memory for tpu_custom_call.1']
    #allocation5 [shape = 'u8[32768]{0}', space=vmem, size = 0x8000, scoped, tag = 'input window, operand 1, single buffered']
    #allocation6 [shape = 's32[1]{0}', space=sflag, size = 0x4, scoped, tag = 'scoped memory for tpu_custom_call.1']
    #allocation7 [shape = 'u8[131072]{0}', space=vmem, size = 0x20000, scoped, tag = 'output window, operand 0, single buffered']
    %8 = vsyncpa [#allocation3], 0
    %9 = vsyncpa [#allocation6], 0
    %10 = vsyncpa [#allocation4], 0
    // Predicated region
    $region2: #{tpu_custom_call.1} parent=1 // pred_check
      _
    $region3: #{tpu_custom_call.1} parent=1 // pred_check_branch
      %12 = sbr.rel (0) target = $region5
    $region4: #{tpu_custom_call.1} parent=1 // pred_region
      %s14 = ssub.s32 4096, 4096
      %15 = vsyncadd [#allocation3], %s14
      %s16 = sshll.u32 [#allocation2], 4
      %s17 = int_to_ptr.vmem [resolvable:$true] %s16
      %22 = dma.hbm_to_vmem [thread:$0]  %s0, 4096, %s17, [#allocation3], 64, 64, 4
    $region5: #{tpu_custom_call.1} parent=1 // pred_fallthru
      _
    // Predicated region
    $region6: #{tpu_custom_call.1} parent=1 // pred_check
      _
    $region7: #{tpu_custom_call.1} parent=1 // pred_check_branch
      %24 = sbr.rel (0) target = $region9
    $region8: #{tpu_custom_call.1} parent=1 // pred_region
      %s26 = ssub.s32 1024, 1024
      %27 = vsyncadd [#allocation6], %s26
      %s28 = sshll.u32 [#allocation5], 4
      %s29 = int_to_ptr.vmem [resolvable:$true] %s28
      %34 = dma.hbm_to_vmem [thread:$0]  %s1, 1024, %s29, [#allocation6], 64, 64, 4
    $region9: #{tpu_custom_call.1} parent=1 // pred_fallthru
      _
    // Predicated region
    $region10: #{tpu_custom_call.1} parent=1 // pred_check
      _
    $region11: #{tpu_custom_call.1} parent=1 // pred_check_branch
      %36 = sbr.rel (0) target = $region13
    $region12: #{tpu_custom_call.1} parent=1 // pred_region
      _
    $region13: #{tpu_custom_call.1} parent=1 // pred_fallthru
      _
    // Predicated region
    $region14: #{tpu_custom_call.1} parent=1 // pred_check
      _
    $region15: #{tpu_custom_call.1} parent=1 // pred_check_branch
      %38 = sbr.rel (0) target = $region17
    $region16: #{tpu_custom_call.1} parent=1 // pred_region
      %39 = dma.done [#allocation3], 4096
    $region17: #{tpu_custom_call.1} parent=1 // pred_fallthru
      _
    // Predicated region
    $region18: #{tpu_custom_call.1} parent=1 // pred_check
      _
    $region19: #{tpu_custom_call.1} parent=1 // pred_check_branch
      %41 = sbr.rel (0) target = $region21
    $region20: #{tpu_custom_call.1} parent=1 // pred_region
      %42 = dma.done [#allocation6], 1024
    $region21: #{tpu_custom_call.1} parent=1 // pred_fallthru
      _
    %v44 = vld [vmem:[%s2] sm:$0x1]
    %v45 = vld [vmem:[#allocation2] sm:$0xf]
    %v46 = vld [vmem:[#allocation2 + $0x4] sm:$0xf]
    %v47 = vld [vmem:[#allocation2 + $0x8] sm:$0xf]
    %v48 = vld [vmem:[#allocation2 + $0xc] sm:$0xf]
    %v49 = vld [vmem:[#allocation2 + $0x10] sm:$0xf]
    %v50 = vld [vmem:[#allocation2 + $0x14] sm:$0xf]
    %v51 = vld [vmem:[#allocation2 + $0x18] sm:$0xf]
    %v52 = vld [vmem:[#allocation2 + $0x1c] sm:$0xf]
    %v53 = vld [vmem:[#allocation2 + $0x20] sm:$0xf]
    %v54 = vld [vmem:[#allocation2 + $0x24] sm:$0xf]
    %v55 = vld [vmem:[#allocation2 + $0x28] sm:$0xf]
    %v56 = vld [vmem:[#allocation2 + $0x2c] sm:$0xf]
    %v57 = vld [vmem:[#allocation2 + $0x30] sm:$0xf]
    %v58 = vld [vmem:[#allocation2 + $0x34] sm:$0xf]
    %v59 = vld [vmem:[#allocation2 + $0x38] sm:$0xf]
    %v60 = vld [vmem:[#allocation2 + $0x3c] sm:$0xf]
    %v61 = vld [vmem:[#allocation2 + $0x40] sm:$0xf]
    %v62 = vld [vmem:[#allocation2 + $0x44] sm:$0xf]
    %v63 = vld [vmem:[#allocation2 + $0x48] sm:$0xf]
    %v64 = vld [vmem:[#allocation2 + $0x4c] sm:$0xf]
    %v65 = vld [vmem:[#allocation2 + $0x50] sm:$0xf]
    %v66 = vld [vmem:[#allocation2 + $0x54] sm:$0xf]
    %v67 = vld [vmem:[#allocation2 + $0x58] sm:$0xf]
    %v68 = vld [vmem:[#allocation2 + $0x5c] sm:$0xf]
    %v69 = vld [vmem:[#allocation2 + $0x60] sm:$0xf]
    %v70 = vld [vmem:[#allocation2 + $0x64] sm:$0xf]
    %v71 = vld [vmem:[#allocation2 + $0x68] sm:$0xf]
    %v72 = vld [vmem:[#allocation2 + $0x6c] sm:$0xf]
    %v73 = vld [vmem:[#allocation2 + $0x70] sm:$0xf]
    %v74 = vld [vmem:[#allocation2 + $0x74] sm:$0xf]
    %v75 = vld [vmem:[#allocation2 + $0x78] sm:$0xf]
    %v76 = vld [vmem:[#allocation2 + $0x7c] sm:$0xf]
    %v77 = vld [vmem:[#allocation2 + $0x80] sm:$0xf]
    %v78 = vld [vmem:[#allocation2 + $0x84] sm:$0xf]
    %v79 = vld [vmem:[#allocation2 + $0x88] sm:$0xf]
    %v80 = vld [vmem:[#allocation2 + $0x8c] sm:$0xf]
    %v81 = vld [vmem:[#allocation2 + $0x90] sm:$0xf]
    %v82 = vld [vmem:[#allocation2 + $0x94] sm:$0xf]
    %v83 = vld [vmem:[#allocation2 + $0x98] sm:$0xf]
    %v84 = vld [vmem:[#allocation2 + $0x9c] sm:$0xf]
    %v85 = vld [vmem:[#allocation2 + $0xa0] sm:$0xf]
    %v86 = vld [vmem:[#allocation2 + $0xa4] sm:$0xf]
    %v87 = vld [vmem:[#allocation2 + $0xa8] sm:$0xf]
    %v88 = vld [vmem:[#allocation2 + $0xac] sm:$0xf]
    %v89 = vld [vmem:[#allocation2 + $0xb0] sm:$0xf]
    %v90 = vld [vmem:[#allocation2 + $0xb4] sm:$0xf]
    %v91 = vld [vmem:[#allocation2 + $0xb8] sm:$0xf]
    %v92 = vld [vmem:[#allocation2 + $0xbc] sm:$0xf]
    %v93 = vld [vmem:[#allocation2 + $0xc0] sm:$0xf]
    %v94 = vld [vmem:[#allocation2 + $0xc4] sm:$0xf]
    %v95 = vld [vmem:[#allocation2 + $0xc8] sm:$0xf]
    %v96 = vld [vmem:[#allocation2 + $0xcc] sm:$0xf]
    %v97 = vld [vmem:[#allocation2 + $0xd0] sm:$0xf]
    %v98 = vld [vmem:[#allocation2 + $0xd4] sm:$0xf]
    %v99 = vld [vmem:[#allocation2 + $0xd8] sm:$0xf]
    %v100 = vld [vmem:[#allocation2 + $0xdc] sm:$0xf]
    %v101 = vld [vmem:[#allocation2 + $0xe0] sm:$0xf]
    %v102 = vld [vmem:[#allocation2 + $0xe4] sm:$0xf]
    %v103 = vld [vmem:[#allocation2 + $0xe8] sm:$0xf]
    %v104 = vld [vmem:[#allocation2 + $0xec] sm:$0xf]
    %v105 = vld [vmem:[#allocation2 + $0xf0] sm:$0xf]
    %v106 = vld [vmem:[#allocation2 + $0xf4] sm:$0xf]
    %v107 = vld [vmem:[#allocation2 + $0xf8] sm:$0xf]
    %v108 = vld [vmem:[#allocation2 + $0xfc] sm:$0xf]
    %v109 = vld [vmem:[#allocation5] sm:$0xf]
    %v110 = vld [vmem:[#allocation5 + $0x4] sm:$0xf]
    %v111 = vld [vmem:[#allocation5 + $0x8] sm:$0xf]
    %v112 = vld [vmem:[#allocation5 + $0xc] sm:$0xf]
    %v113 = vld [vmem:[#allocation5 + $0x10] sm:$0xf]
    %v114 = vld [vmem:[#allocation5 + $0x14] sm:$0xf]
    %v115 = vld [vmem:[#allocation5 + $0x18] sm:$0xf]
    %v116 = vld [vmem:[#allocation5 + $0x1c] sm:$0xf]
    %v117 = vld [vmem:[#allocation5 + $0x20] sm:$0xf]
    %v118 = vld [vmem:[#allocation5 + $0x24] sm:$0xf]
    %v119 = vld [vmem:[#allocation5 + $0x28] sm:$0xf]
    %v120 = vld [vmem:[#allocation5 + $0x2c] sm:$0xf]
    %v121 = vld [vmem:[#allocation5 + $0x30] sm:$0xf]
    %v122 = vld [vmem:[#allocation5 + $0x34] sm:$0xf]
    %v123 = vld [vmem:[#allocation5 + $0x38] sm:$0xf]
    %v124 = vld [vmem:[#allocation5 + $0x3c] sm:$0xf]
    %v126 = vlaneseq
    %v127 = vshrl.u32 %v126, 7
    %v128 = vsub.s32 0, %v127
    %v129 = vrot.slane %v44, %v128
    %v195 = vunpack.c.l.b16 %v45
    %v196 = vunpack.c.l.b16 %v46
    %v197 = vunpack.c.l.b16 %v47
    %v198 = vunpack.c.l.b16 %v48
    %v199 = vunpack.c.l.b16 %v49
    %v200 = vunpack.c.l.b16 %v50
    %v201 = vunpack.c.l.b16 %v51
    %v202 = vunpack.c.l.b16 %v52
    %v203 = vunpack.c.l.b16 %v53
    %v204 = vunpack.c.l.b16 %v54
    %v205 = vunpack.c.l.b16 %v55
    %v206 = vunpack.c.l.b16 %v56
    %v207 = vunpack.c.l.b16 %v57
    %v208 = vunpack.c.l.b16 %v58
    %v209 = vunpack.c.l.b16 %v59
    %v210 = vunpack.c.l.b16 %v60
    %v211 = vunpack.c.l.b16 %v61
    %v212 = vunpack.c.l.b16 %v62
    %v213 = vunpack.c.l.b16 %v63
    %v214 = vunpack.c.l.b16 %v64
    %v215 = vunpack.c.l.b16 %v65
    %v216 = vunpack.c.l.b16 %v66
    %v217 = vunpack.c.l.b16 %v67
    %v218 = vunpack.c.l.b16 %v68
    %v219 = vunpack.c.l.b16 %v69
    %v220 = vunpack.c.l.b16 %v70
    %v221 = vunpack.c.l.b16 %v71
    %v222 = vunpack.c.l.b16 %v72
    %v223 = vunpack.c.l.b16 %v73
    %v224 = vunpack.c.l.b16 %v74
    %v225 = vunpack.c.l.b16 %v75
    %v226 = vunpack.c.l.b16 %v76
    %v227 = vunpack.c.l.b16 %v77
    %v228 = vunpack.c.l.b16 %v78
    %v229 = vunpack.c.l.b16 %v79
    %v230 = vunpack.c.l.b16 %v80
    %v231 = vunpack.c.l.b16 %v81
    %v232 = vunpack.c.l.b16 %v82
    %v233 = vunpack.c.l.b16 %v83
    %v234 = vunpack.c.l.b16 %v84
    %v235 = vunpack.c.l.b16 %v85
    %v236 = vunpack.c.l.b16 %v86
    %v237 = vunpack.c.l.b16 %v87
    %v238 = vunpack.c.l.b16 %v88
    %v239 = vunpack.c.l.b16 %v89
    %v240 = vunpack.c.l.b16 %v90
    %v241 = vunpack.c.l.b16 %v91
    %v242 = vunpack.c.l.b16 %v92
    %v243 = vunpack.c.l.b16 %v93
    %v244 = vunpack.c.l.b16 %v94
    %v245 = vunpack.c.l.b16 %v95
    %v246 = vunpack.c.l.b16 %v96
    %v247 = vunpack.c.l.b16 %v97
    %v248 = vunpack.c.l.b16 %v98
    %v249 = vunpack.c.l.b16 %v99
    %v250 = vunpack.c.l.b16 %v100
    %v251 = vunpack.c.l.b16 %v101
    %v252 = vunpack.c.l.b16 %v102
    %v253 = vunpack.c.l.b16 %v103
    %v254 = vunpack.c.l.b16 %v104
    %v255 = vunpack.c.l.b16 %v105
    %v256 = vunpack.c.l.b16 %v106
    %v257 = vunpack.c.l.b16 %v107
    %v258 = vunpack.c.l.b16 %v108
    %v259 = vpack.c.b16 %v196, %v195
    %v260 = vpack.c.b16 %v198, %v197
    %v261 = vpack.c.b16 %v200, %v199
    %v262 = vpack.c.b16 %v202, %v201
    %v263 = vpack.c.b16 %v204, %v203
    %v264 = vpack.c.b16 %v206, %v205
    %v265 = vpack.c.b16 %v208, %v207
    %v266 = vpack.c.b16 %v210, %v209
    %v267 = vpack.c.b16 %v212, %v211
    %v268 = vpack.c.b16 %v214, %v213
    %v269 = vpack.c.b16 %v216, %v215
    %v270 = vpack.c.b16 %v218, %v217
    %v271 = vpack.c.b16 %v220, %v219
    %v272 = vpack.c.b16 %v222, %v221
    %v273 = vpack.c.b16 %v224, %v223
    %v274 = vpack.c.b16 %v226, %v225
    %v275 = vpack.c.b16 %v228, %v227
    %v276 = vpack.c.b16 %v230, %v229
    %v277 = vpack.c.b16 %v232, %v231
    %v278 = vpack.c.b16 %v234, %v233
    %v279 = vpack.c.b16 %v236, %v235
    %v280 = vpack.c.b16 %v238, %v237
    %v281 = vpack.c.b16 %v240, %v239
    %v282 = vpack.c.b16 %v242, %v241
    %v283 = vpack.c.b16 %v244, %v243
    %v284 = vpack.c.b16 %v246, %v245
    %v285 = vpack.c.b16 %v248, %v247
    %v286 = vpack.c.b16 %v250, %v249
    %v287 = vpack.c.b16 %v252, %v251
    %v288 = vpack.c.b16 %v254, %v253
    %v289 = vpack.c.b16 %v256, %v255
    %v290 = vpack.c.b16 %v258, %v257
    %v339 = vunpack.c.l.b16 %v109
    %v340 = vunpack.c.l.b16 %v110
    %v341 = vunpack.c.l.b16 %v111
    %v342 = vunpack.c.l.b16 %v112
    %v343 = vunpack.c.l.b16 %v113
    %v344 = vunpack.c.l.b16 %v114
    %v345 = vunpack.c.l.b16 %v115
    %v346 = vunpack.c.l.b16 %v116
    %v347 = vunpack.c.l.b16 %v117
    %v348 = vunpack.c.l.b16 %v118
    %v349 = vunpack.c.l.b16 %v119
    %v350 = vunpack.c.l.b16 %v120
    %v351 = vunpack.c.l.b16 %v121
    %v352 = vunpack.c.l.b16 %v122
    %v353 = vunpack.c.l.b16 %v123
    %v354 = vunpack.c.l.b16 %v124
    %v355 = vpack.c.b16 %v340, %v339
    %v356 = vpack.c.b16 %v342, %v341
    %v357 = vpack.c.b16 %v344, %v343
    %v358 = vpack.c.b16 %v346, %v345
    %v359 = vpack.c.b16 %v348, %v347
    %v360 = vpack.c.b16 %v350, %v349
    %v361 = vpack.c.b16 %v352, %v351
    %v362 = vpack.c.b16 %v354, %v353
    %371 = vmatprep.subr.bf16.mxu0 0
    %372 = vmatpush1.bf16.msra.mxu0 %v362
    %373 = vmatprep.subr.bf16.mxu0 0
    %374 = vmatpush1.bf16.msra.mxu0 %v361
    %375 = vmatprep.subr.bf16.mxu0 0
    %376 = vmatpush1.bf16.msra.mxu0 %v360
    %377 = vmatprep.subr.bf16.mxu0 0
    %378 = vmatpush1.bf16.msra.mxu0 %v359
    %379 = vmatprep.subr.bf16.mxu0 0
    %380 = vmatpush1.bf16.msra.mxu0 %v358
    %381 = vmatprep.subr.bf16.mxu0 0
    %382 = vmatpush1.bf16.msra.mxu0 %v357
    %383 = vmatprep.subr.bf16.mxu0 0
    %384 = vmatpush1.bf16.msra.mxu0 %v356
    %385 = vmatprep.subr.bf16.mxu0 0
    %386 = vmatpush1.bf16.msra.mxu0 %v355
    %387 = vmatprep.subr.bf16.mxu0 0
    %388 = vmatpush2.bf16.msra.mxu0 0
    %389 = vmatprep.subr.bf16.mxu0 0
    %390 = vmatpush2.bf16.msra.mxu0 0
    %391 = vmatprep.subr.bf16.mxu0 0
    %392 = vmatpush2.bf16.msra.mxu0 0
    %393 = vmatprep.subr.bf16.mxu0 0
    %394 = vmatpush2.bf16.msra.mxu0 0
    %395 = vmatprep.subr.bf16.mxu0 0
    %396 = vmatpush2.bf16.msra.mxu0 0
    %397 = vmatprep.subr.bf16.mxu0 0
    %398 = vmatpush2.bf16.msra.mxu0 0
    %399 = vmatprep.subr.bf16.mxu0 0
    %400 = vmatpush2.bf16.msra.mxu0 0
    %401 = vmatprep.subr.bf16.mxu0 0
    %402 = vmatpush2.bf16.msra.mxu0 0
    %403 = vmatprep.mubr.bf16.mxu0 0
    %404 = vmatmul.mubr.bf16.gmra.mxu0 %v259
    %v405 = vpop.f32.mrf.mxu0
    %v406 = vadd.f32 %v129, %v405
    %v407 = vpop.f32.mrf.mxu0
    %v408 = vpop.f32.mrf.mxu0
    %v409 = vadd.f32 %v129, %v408
    %v410 = vpop.f32.mrf.mxu0
    %411 = vmatprep.mubr.bf16.mxu0 0
    %412 = vmatmul.mubr.bf16.gmra.mxu0 %v260
    %v413 = vpop.f32.mrf.mxu0
    %v414 = vadd.f32 %v129, %v413
    %v415 = vpop.f32.mrf.mxu0
    %v416 = vpop.f32.mrf.mxu0
    %v417 = vadd.f32 %v129, %v416
    %v418 = vpop.f32.mrf.mxu0
    %419 = vmatprep.mubr.bf16.mxu0 0
    %420 = vmatmul.mubr.bf16.gmra.mxu0 %v261
    %v421 = vpop.f32.mrf.mxu0
    %v422 = vadd.f32 %v129, %v421
    %v423 = vpop.f32.mrf.mxu0
    %v424 = vpop.f32.mrf.mxu0
    %v425 = vadd.f32 %v129, %v424
    %v426 = vpop.f32.mrf.mxu0
    %427 = vmatprep.mubr.bf16.mxu0 0
    %428 = vmatmul.mubr.bf16.gmra.mxu0 %v262
    %v429 = vpop.f32.mrf.mxu0
    %v430 = vadd.f32 %v129, %v429
    %v431 = vpop.f32.mrf.mxu0
    %v432 = vpop.f32.mrf.mxu0
    %v433 = vadd.f32 %v129, %v432
    %v434 = vpop.f32.mrf.mxu0
    %435 = vmatprep.mubr.bf16.mxu0 0
    %436 = vmatmul.mubr.bf16.gmra.mxu0 %v263
    %v437 = vpop.f32.mrf.mxu0
    %v438 = vadd.f32 %v129, %v437
    %v439 = vpop.f32.mrf.mxu0
    %v440 = vpop.f32.mrf.mxu0
    %v441 = vadd.f32 %v129, %v440
    %v442 = vpop.f32.mrf.mxu0
    %443 = vmatprep.mubr.bf16.mxu0 0
    %444 = vmatmul.mubr.bf16.gmra.mxu0 %v264
    %v445 = vpop.f32.mrf.mxu0
    %v446 = vadd.f32 %v129, %v445
    %v447 = vpop.f32.mrf.mxu0
    %v448 = vpop.f32.mrf.mxu0
    %v449 = vadd.f32 %v129, %v448
    %v450 = vpop.f32.mrf.mxu0
    %451 = vmatprep.mubr.bf16.mxu0 0
    %452 = vmatmul.mubr.bf16.gmra.mxu0 %v265
    %v453 = vpop.f32.mrf.mxu0
    %v454 = vadd.f32 %v129, %v453
    %v455 = vpop.f32.mrf.mxu0
    %v456 = vpop.f32.mrf.mxu0
    %v457 = vadd.f32 %v129, %v456
    %v458 = vpop.f32.mrf.mxu0
    %459 = vmatprep.mubr.bf16.mxu0 0
    %460 = vmatmul.mubr.bf16.gmra.mxu0 %v266
    %v461 = vpop.f32.mrf.mxu0
    %v462 = vadd.f32 %v129, %v461
    %v463 = vpop.f32.mrf.mxu0
    %v464 = vpop.f32.mrf.mxu0
    %v465 = vadd.f32 %v129, %v464
    %v466 = vpop.f32.mrf.mxu0
    %467 = vmatprep.mubr.bf16.mxu0 0
    %468 = vmatmul.mubr.bf16.gmra.mxu0 %v267
    %v469 = vpop.f32.mrf.mxu0
    %v470 = vadd.f32 %v129, %v469
    %v471 = vpop.f32.mrf.mxu0
    %v472 = vpop.f32.mrf.mxu0
    %v473 = vadd.f32 %v129, %v472
    %v474 = vpop.f32.mrf.mxu0
    %475 = vmatprep.mubr.bf16.mxu0 0
    %476 = vmatmul.mubr.bf16.gmra.mxu0 %v268
    %v477 = vpop.f32.mrf.mxu0
    %v478 = vadd.f32 %v129, %v477
    %v479 = vpop.f32.mrf.mxu0
    %v480 = vpop.f32.mrf.mxu0
    %v481 = vadd.f32 %v129, %v480
    %v482 = vpop.f32.mrf.mxu0
    %483 = vmatprep.mubr.bf16.mxu0 0
    %484 = vmatmul.mubr.bf16.gmra.mxu0 %v269
    %v485 = vpop.f32.mrf.mxu0
    %v486 = vadd.f32 %v129, %v485
    %v487 = vpop.f32.mrf.mxu0
    %v488 = vpop.f32.mrf.mxu0
    %v489 = vadd.f32 %v129, %v488
    %v490 = vpop.f32.mrf.mxu0
    %491 = vmatprep.mubr.bf16.mxu0 0
    %492 = vmatmul.mubr.bf16.gmra.mxu0 %v270
    %v493 = vpop.f32.mrf.mxu0
    %v494 = vadd.f32 %v129, %v493
    %v495 = vpop.f32.mrf.mxu0
    %v496 = vpop.f32.mrf.mxu0
    %v497 = vadd.f32 %v129, %v496
    %v498 = vpop.f32.mrf.mxu0
    %499 = vmatprep.mubr.bf16.mxu0 0
    %500 = vmatmul.mubr.bf16.gmra.mxu0 %v271
    %v501 = vpop.f32.mrf.mxu0
    %v502 = vadd.f32 %v129, %v501
    %v503 = vpop.f32.mrf.mxu0
    %v504 = vpop.f32.mrf.mxu0
    %v505 = vadd.f32 %v129, %v504
    %v506 = vpop.f32.mrf.mxu0
    %507 = vmatprep.mubr.bf16.mxu0 0
    %508 = vmatmul.mubr.bf16.gmra.mxu0 %v272
    %v509 = vpop.f32.mrf.mxu0
    %v510 = vadd.f32 %v129, %v509
    %v511 = vpop.f32.mrf.mxu0
    %v512 = vpop.f32.mrf.mxu0
    %v513 = vadd.f32 %v129, %v512
    %v514 = vpop.f32.mrf.mxu0
    %515 = vmatprep.mubr.bf16.mxu0 0
    %516 = vmatmul.mubr.bf16.gmra.mxu0 %v273
    %v517 = vpop.f32.mrf.mxu0
    %v518 = vadd.f32 %v129, %v517
    %v519 = vpop.f32.mrf.mxu0
    %v520 = vpop.f32.mrf.mxu0
    %v521 = vadd.f32 %v129, %v520
    %v522 = vpop.f32.mrf.mxu0
    %523 = vmatprep.mubr.bf16.mxu0 0
    %524 = vmatmul.mubr.bf16.gmra.mxu0 %v274
    %v525 = vpop.f32.mrf.mxu0
    %v526 = vadd.f32 %v129, %v525
    %v527 = vpop.f32.mrf.mxu0
    %v528 = vpop.f32.mrf.mxu0
    %v529 = vadd.f32 %v129, %v528
    %v530 = vpop.f32.mrf.mxu0
    %531 = vmatprep.mubr.bf16.mxu0 0
    %532 = vmatmul.mubr.bf16.gmra.mxu0 %v275
    %v533 = vpop.f32.mrf.mxu0
    %v534 = vadd.f32 %v129, %v533
    %v535 = vpop.f32.mrf.mxu0
    %v536 = vpop.f32.mrf.mxu0
    %v537 = vadd.f32 %v129, %v536
    %v538 = vpop.f32.mrf.mxu0
    %539 = vmatprep.mubr.bf16.mxu0 0
    %540 = vmatmul.mubr.bf16.gmra.mxu0 %v276
    %v541 = vpop.f32.mrf.mxu0
    %v542 = vadd.f32 %v129, %v541
    %v543 = vpop.f32.mrf.mxu0
    %v544 = vpop.f32.mrf.mxu0
    %v545 = vadd.f32 %v129, %v544
    %v546 = vpop.f32.mrf.mxu0
    %547 = vmatprep.mubr.bf16.mxu0 0
    %548 = vmatmul.mubr.bf16.gmra.mxu0 %v277
    %v549 = vpop.f32.mrf.mxu0
    %v550 = vadd.f32 %v129, %v549
    %v551 = vpop.f32.mrf.mxu0
    %v552 = vpop.f32.mrf.mxu0
    %v553 = vadd.f32 %v129, %v552
    %v554 = vpop.f32.mrf.mxu0
    %555 = vmatprep.mubr.bf16.mxu0 0
    %556 = vmatmul.mubr.bf16.gmra.mxu0 %v278
    %v557 = vpop.f32.mrf.mxu0
    %v558 = vadd.f32 %v129, %v557
    %v559 = vpop.f32.mrf.mxu0
    %v560 = vpop.f32.mrf.mxu0
    %v561 = vadd.f32 %v129, %v560
    %v562 = vpop.f32.mrf.mxu0
    %563 = vmatprep.mubr.bf16.mxu0 0
    %564 = vmatmul.mubr.bf16.gmra.mxu0 %v279
    %v565 = vpop.f32.mrf.mxu0
    %v566 = vadd.f32 %v129, %v565
    %v567 = vpop.f32.mrf.mxu0
    %v568 = vpop.f32.mrf.mxu0
    %v569 = vadd.f32 %v129, %v568
    %v570 = vpop.f32.mrf.mxu0
    %571 = vmatprep.mubr.bf16.mxu0 0
    %572 = vmatmul.mubr.bf16.gmra.mxu0 %v280
    %v573 = vpop.f32.mrf.mxu0
    %v574 = vadd.f32 %v129, %v573
    %v575 = vpop.f32.mrf.mxu0
    %v576 = vpop.f32.mrf.mxu0
    %v577 = vadd.f32 %v129, %v576
    %v578 = vpop.f32.mrf.mxu0
    %579 = vmatprep.mubr.bf16.mxu0 0
    %580 = vmatmul.mubr.bf16.gmra.mxu0 %v281
    %v581 = vpop.f32.mrf.mxu0
    %v582 = vadd.f32 %v129, %v581
    %v583 = vpop.f32.mrf.mxu0
    %v584 = vpop.f32.mrf.mxu0
    %v585 = vadd.f32 %v129, %v584
    %v586 = vpop.f32.mrf.mxu0
    %587 = vmatprep.mubr.bf16.mxu0 0
    %588 = vmatmul.mubr.bf16.gmra.mxu0 %v282
    %v589 = vpop.f32.mrf.mxu0
    %v590 = vadd.f32 %v129, %v589
    %v591 = vpop.f32.mrf.mxu0
    %v592 = vpop.f32.mrf.mxu0
    %v593 = vadd.f32 %v129, %v592
    %v594 = vpop.f32.mrf.mxu0
    %595 = vmatprep.mubr.bf16.mxu0 0
    %596 = vmatmul.mubr.bf16.gmra.mxu0 %v283
    %v597 = vpop.f32.mrf.mxu0
    %v598 = vadd.f32 %v129, %v597
    %v599 = vpop.f32.mrf.mxu0
    %v600 = vpop.f32.mrf.mxu0
    %v601 = vadd.f32 %v129, %v600
    %v602 = vpop.f32.mrf.mxu0
    %603 = vmatprep.mubr.bf16.mxu0 0
    %604 = vmatmul.mubr.bf16.gmra.mxu0 %v284
    %v605 = vpop.f32.mrf.mxu0
    %v606 = vadd.f32 %v129, %v605
    %v607 = vpop.f32.mrf.mxu0
    %v608 = vpop.f32.mrf.mxu0
    %v609 = vadd.f32 %v129, %v608
    %v610 = vpop.f32.mrf.mxu0
    %611 = vmatprep.mubr.bf16.mxu0 0
    %612 = vmatmul.mubr.bf16.gmra.mxu0 %v285
    %v613 = vpop.f32.mrf.mxu0
    %v614 = vadd.f32 %v129, %v613
    %v615 = vpop.f32.mrf.mxu0
    %v616 = vpop.f32.mrf.mxu0
    %v617 = vadd.f32 %v129, %v616
    %v618 = vpop.f32.mrf.mxu0
    %619 = vmatprep.mubr.bf16.mxu0 0
    %620 = vmatmul.mubr.bf16.gmra.mxu0 %v286
    %v621 = vpop.f32.mrf.mxu0
    %v622 = vadd.f32 %v129, %v621
    %v623 = vpop.f32.mrf.mxu0
    %v624 = vpop.f32.mrf.mxu0
    %v625 = vadd.f32 %v129, %v624
    %v626 = vpop.f32.mrf.mxu0
    %627 = vmatprep.mubr.bf16.mxu0 0
    %628 = vmatmul.mubr.bf16.gmra.mxu0 %v287
    %v629 = vpop.f32.mrf.mxu0
    %v630 = vadd.f32 %v129, %v629
    %v631 = vpop.f32.mrf.mxu0
    %v632 = vpop.f32.mrf.mxu0
    %v633 = vadd.f32 %v129, %v632
    %v634 = vpop.f32.mrf.mxu0
    %635 = vmatprep.mubr.bf16.mxu0 0
    %636 = vmatmul.mubr.bf16.gmra.mxu0 %v288
    %v637 = vpop.f32.mrf.mxu0
    %v638 = vadd.f32 %v129, %v637
    %v639 = vpop.f32.mrf.mxu0
    %v640 = vpop.f32.mrf.mxu0
    %v641 = vadd.f32 %v129, %v640
    %v642 = vpop.f32.mrf.mxu0
    %643 = vmatprep.mubr.bf16.mxu0 0
    %644 = vmatmul.mubr.bf16.gmra.mxu0 %v289
    %v645 = vpop.f32.mrf.mxu0
    %v646 = vadd.f32 %v129, %v645
    %v647 = vpop.f32.mrf.mxu0
    %v648 = vpop.f32.mrf.mxu0
    %v649 = vadd.f32 %v129, %v648
    %v650 = vpop.f32.mrf.mxu0
    %651 = vmatprep.mubr.bf16.mxu0 0
    %652 = vmatmul.mubr.bf16.gmra.mxu0 %v290
    %v653 = vpop.f32.mrf.mxu0
    %v654 = vadd.f32 %v129, %v653
    %v655 = vpop.f32.mrf.mxu0
    %v656 = vpop.f32.mrf.mxu0
    %v657 = vadd.f32 %v129, %v656
    %v658 = vpop.f32.mrf.mxu0
    %659 = vdwg.mxu0
    %vm660 = vcmp.ge.f32.partialorder %v406, 0.0
    %vm661 = vcmp.ge.f32.partialorder %v409, 0.0
    %vm662 = vcmp.ge.f32.partialorder %v414, 0.0
    %vm663 = vcmp.ge.f32.partialorder %v417, 0.0
    %vm664 = vcmp.ge.f32.partialorder %v422, 0.0
    %vm665 = vcmp.ge.f32.partialorder %v425, 0.0
    %vm666 = vcmp.ge.f32.partialorder %v430, 0.0
    %vm667 = vcmp.ge.f32.partialorder %v433, 0.0
    %vm668 = vcmp.ge.f32.partialorder %v438, 0.0
    %vm669 = vcmp.ge.f32.partialorder %v441, 0.0
    %vm670 = vcmp.ge.f32.partialorder %v446, 0.0
    %vm671 = vcmp.ge.f32.partialorder %v449, 0.0
    %vm672 = vcmp.ge.f32.partialorder %v454, 0.0
    %vm673 = vcmp.ge.f32.partialorder %v457, 0.0
    %vm674 = vcmp.ge.f32.partialorder %v462, 0.0
    %vm675 = vcmp.ge.f32.partialorder %v465, 0.0
    %vm676 = vcmp.ge.f32.partialorder %v470, 0.0
    %vm677 = vcmp.ge.f32.partialorder %v473, 0.0
    %vm678 = vcmp.ge.f32.partialorder %v478, 0.0
    %vm679 = vcmp.ge.f32.partialorder %v481, 0.0
    %vm680 = vcmp.ge.f32.partialorder %v486, 0.0
    %vm681 = vcmp.ge.f32.partialorder %v489, 0.0
    %vm682 = vcmp.ge.f32.partialorder %v494, 0.0
    %vm683 = vcmp.ge.f32.partialorder %v497, 0.0
    %vm684 = vcmp.ge.f32.partialorder %v502, 0.0
    %vm685 = vcmp.ge.f32.partialorder %v505, 0.0
    %vm686 = vcmp.ge.f32.partialorder %v510, 0.0
    %vm687 = vcmp.ge.f32.partialorder %v513, 0.0
    %vm688 = vcmp.ge.f32.partialorder %v518, 0.0
    %vm689 = vcmp.ge.f32.partialorder %v521, 0.0
    %vm690 = vcmp.ge.f32.partialorder %v526, 0.0
    %vm691 = vcmp.ge.f32.partialorder %v529, 0.0
    %vm692 = vcmp.ge.f32.partialorder %v534, 0.0
    %vm693 = vcmp.ge.f32.partialorder %v537, 0.0
    %vm694 = vcmp.ge.f32.partialorder %v542, 0.0
    %vm695 = vcmp.ge.f32.partialorder %v545, 0.0
    %vm696 = vcmp.ge.f32.partialorder %v550, 0.0
    %vm697 = vcmp.ge.f32.partialorder %v553, 0.0
    %vm698 = vcmp.ge.f32.partialorder %v558, 0.0
    %vm699 = vcmp.ge.f32.partialorder %v561, 0.0
    %vm700 = vcmp.ge.f32.partialorder %v566, 0.0
    %vm701 = vcmp.ge.f32.partialorder %v569, 0.0
    %vm702 = vcmp.ge.f32.partialorder %v574, 0.0
    %vm703 = vcmp.ge.f32.partialorder %v577, 0.0
    %vm704 = vcmp.ge.f32.partialorder %v582, 0.0
    %vm705 = vcmp.ge.f32.partialorder %v585, 0.0
    %vm706 = vcmp.ge.f32.partialorder %v590, 0.0
    %vm707 = vcmp.ge.f32.partialorder %v593, 0.0
    %vm708 = vcmp.ge.f32.partialorder %v598, 0.0
    %vm709 = vcmp.ge.f32.partialorder %v601, 0.0
    %vm710 = vcmp.ge.f32.partialorder %v606, 0.0
    %vm711 = vcmp.ge.f32.partialorder %v609, 0.0
    %vm712 = vcmp.ge.f32.partialorder %v614, 0.0
    %vm713 = vcmp.ge.f32.partialorder %v617, 0.0
    %vm714 = vcmp.ge.f32.partialorder %v622, 0.0
    %vm715 = vcmp.ge.f32.partialorder %v625, 0.0
    %vm716 = vcmp.ge.f32.partialorder %v630, 0.0
    %vm717 = vcmp.ge.f32.partialorder %v633, 0.0
    %vm718 = vcmp.ge.f32.partialorder %v638, 0.0
    %vm719 = vcmp.ge.f32.partialorder %v641, 0.0
    %vm720 = vcmp.ge.f32.partialorder %v646, 0.0
    %vm721 = vcmp.ge.f32.partialorder %v649, 0.0
    %vm722 = vcmp.ge.f32.partialorder %v654, 0.0
    %vm723 = vcmp.ge.f32.partialorder %v657, 0.0
    %v724 = vmul.f32 %v406, 0.01
    %v725 = vmul.f32 %v409, 0.01
    %v726 = vmul.f32 %v414, 0.01
    %v727 = vmul.f32 %v417, 0.01
    %v728 = vmul.f32 %v422, 0.01
    %v729 = vmul.f32 %v425, 0.01
    %v730 = vmul.f32 %v430, 0.01
    %v731 = vmul.f32 %v433, 0.01
    %v732 = vmul.f32 %v438, 0.01
    %v733 = vmul.f32 %v441, 0.01
    %v734 = vmul.f32 %v446, 0.01
    %v735 = vmul.f32 %v449, 0.01
    %v736 = vmul.f32 %v454, 0.01
    %v737 = vmul.f32 %v457, 0.01
    %v738 = vmul.f32 %v462, 0.01
    %v739 = vmul.f32 %v465, 0.01
    %v740 = vmul.f32 %v470, 0.01
    %v741 = vmul.f32 %v473, 0.01
    %v742 = vmul.f32 %v478, 0.01
    %v743 = vmul.f32 %v481, 0.01
    %v744 = vmul.f32 %v486, 0.01
    %v745 = vmul.f32 %v489, 0.01
    %v746 = vmul.f32 %v494, 0.01
    %v747 = vmul.f32 %v497, 0.01
    %v748 = vmul.f32 %v502, 0.01
    %v749 = vmul.f32 %v505, 0.01
    %v750 = vmul.f32 %v510, 0.01
    %v751 = vmul.f32 %v513, 0.01
    %v752 = vmul.f32 %v518, 0.01
    %v753 = vmul.f32 %v521, 0.01
    %v754 = vmul.f32 %v526, 0.01
    %v755 = vmul.f32 %v529, 0.01
    %v756 = vmul.f32 %v534, 0.01
    %v757 = vmul.f32 %v537, 0.01
    %v758 = vmul.f32 %v542, 0.01
    %v759 = vmul.f32 %v545, 0.01
    %v760 = vmul.f32 %v550, 0.01
    %v761 = vmul.f32 %v553, 0.01
    %v762 = vmul.f32 %v558, 0.01
    %v763 = vmul.f32 %v561, 0.01
    %v764 = vmul.f32 %v566, 0.01
    %v765 = vmul.f32 %v569, 0.01
    %v766 = vmul.f32 %v574, 0.01
    %v767 = vmul.f32 %v577, 0.01
    %v768 = vmul.f32 %v582, 0.01
    %v769 = vmul.f32 %v585, 0.01
    %v770 = vmul.f32 %v590, 0.01
    %v771 = vmul.f32 %v593, 0.01
    %v772 = vmul.f32 %v598, 0.01
    %v773 = vmul.f32 %v601, 0.01
    %v774 = vmul.f32 %v606, 0.01
    %v775 = vmul.f32 %v609, 0.01
    %v776 = vmul.f32 %v614, 0.01
    %v777 = vmul.f32 %v617, 0.01
    %v778 = vmul.f32 %v622, 0.01
    %v779 = vmul.f32 %v625, 0.01
    %v780 = vmul.f32 %v630, 0.01
    %v781 = vmul.f32 %v633, 0.01
    %v782 = vmul.f32 %v638, 0.01
    %v783 = vmul.f32 %v641, 0.01
    %v784 = vmul.f32 %v646, 0.01
    %v785 = vmul.f32 %v649, 0.01
    %v786 = vmul.f32 %v654, 0.01
    %v787 = vmul.f32 %v657, 0.01
    %v788 = vsel %vm660, %v406, %v724
    %v789 = vsel %vm661, %v409, %v725
    %v790 = vsel %vm662, %v414, %v726
    %v791 = vsel %vm663, %v417, %v727
    %v792 = vsel %vm664, %v422, %v728
    %v793 = vsel %vm665, %v425, %v729
    %v794 = vsel %vm666, %v430, %v730
    %v795 = vsel %vm667, %v433, %v731
    %v796 = vsel %vm668, %v438, %v732
    %v797 = vsel %vm669, %v441, %v733
    %v798 = vsel %vm670, %v446, %v734
    %v799 = vsel %vm671, %v449, %v735
    %v800 = vsel %vm672, %v454, %v736
    %v801 = vsel %vm673, %v457, %v737
    %v802 = vsel %vm674, %v462, %v738
    %v803 = vsel %vm675, %v465, %v739
    %v804 = vsel %vm676, %v470, %v740
    %v805 = vsel %vm677, %v473, %v741
    %v806 = vsel %vm678, %v478, %v742
    %v807 = vsel %vm679, %v481, %v743
    %v808 = vsel %vm680, %v486, %v744
    %v809 = vsel %vm681, %v489, %v745
    %v810 = vsel %vm682, %v494, %v746
    %v811 = vsel %vm683, %v497, %v747
    %v812 = vsel %vm684, %v502, %v748
    %v813 = vsel %vm685, %v505, %v749
    %v814 = vsel %vm686, %v510, %v750
    %v815 = vsel %vm687, %v513, %v751
    %v816 = vsel %vm688, %v518, %v752
    %v817 = vsel %vm689, %v521, %v753
    %v818 = vsel %vm690, %v526, %v754
    %v819 = vsel %vm691, %v529, %v755
    %v820 = vsel %vm692, %v534, %v756
    %v821 = vsel %vm693, %v537, %v757
    %v822 = vsel %vm694, %v542, %v758
    %v823 = vsel %vm695, %v545, %v759
    %v824 = vsel %vm696, %v550, %v760
    %v825 = vsel %vm697, %v553, %v761
    %v826 = vsel %vm698, %v558, %v762
    %v827 = vsel %vm699, %v561, %v763
    %v828 = vsel %vm700, %v566, %v764
    %v829 = vsel %vm701, %v569, %v765
    %v830 = vsel %vm702, %v574, %v766
    %v831 = vsel %vm703, %v577, %v767
    %v832 = vsel %vm704, %v582, %v768
    %v833 = vsel %vm705, %v585, %v769
    %v834 = vsel %vm706, %v590, %v770
    %v835 = vsel %vm707, %v593, %v771
    %v836 = vsel %vm708, %v598, %v772
    %v837 = vsel %vm709, %v601, %v773
    %v838 = vsel %vm710, %v606, %v774
    %v839 = vsel %vm711, %v609, %v775
    %v840 = vsel %vm712, %v614, %v776
    %v841 = vsel %vm713, %v617, %v777
    %v842 = vsel %vm714, %v622, %v778
    %v843 = vsel %vm715, %v625, %v779
    %v844 = vsel %vm716, %v630, %v780
    %v845 = vsel %vm717, %v633, %v781
    %v846 = vsel %vm718, %v638, %v782
    %v847 = vsel %vm719, %v641, %v783
    %v848 = vsel %vm720, %v646, %v784
    %v849 = vsel %vm721, %v649, %v785
    %v850 = vsel %vm722, %v654, %v786
    %v851 = vsel %vm723, %v657, %v787
    %v852 = vmul.f32 %v788, 1.4142135
    %v853 = vmul.f32 %v789, 1.4142135
    %v854 = vmul.f32 %v790, 1.4142135
    %v855 = vmul.f32 %v791, 1.4142135
    %v856 = vmul.f32 %v792, 1.4142135
    %v857 = vmul.f32 %v793, 1.4142135
    %v858 = vmul.f32 %v794, 1.4142135
    %v859 = vmul.f32 %v795, 1.4142135
    %v860 = vmul.f32 %v796, 1.4142135
    %v861 = vmul.f32 %v797, 1.4142135
    %v862 = vmul.f32 %v798, 1.4142135
    %v863 = vmul.f32 %v799, 1.4142135
    %v864 = vmul.f32 %v800, 1.4142135
    %v865 = vmul.f32 %v801, 1.4142135
    %v866 = vmul.f32 %v802, 1.4142135
    %v867 = vmul.f32 %v803, 1.4142135
    %v868 = vmul.f32 %v804, 1.4142135
    %v869 = vmul.f32 %v805, 1.4142135
    %v870 = vmul.f32 %v806, 1.4142135
    %v871 = vmul.f32 %v807, 1.4142135
    %v872 = vmul.f32 %v808, 1.4142135
    %v873 = vmul.f32 %v809, 1.4142135
    %v874 = vmul.f32 %v810, 1.4142135
    %v875 = vmul.f32 %v811, 1.4142135
    %v876 = vmul.f32 %v812, 1.4142135
    %v877 = vmul.f32 %v813, 1.4142135
    %v878 = vmul.f32 %v814, 1.4142135
    %v879 = vmul.f32 %v815, 1.4142135
    %v880 = vmul.f32 %v816, 1.4142135
    %v881 = vmul.f32 %v817, 1.4142135
    %v882 = vmul.f32 %v818, 1.4142135
    %v883 = vmul.f32 %v819, 1.4142135
    %v884 = vmul.f32 %v820, 1.4142135
    %v885 = vmul.f32 %v821, 1.4142135
    %v886 = vmul.f32 %v822, 1.4142135
    %v887 = vmul.f32 %v823, 1.4142135
    %v888 = vmul.f32 %v824, 1.4142135
    %v889 = vmul.f32 %v825, 1.4142135
    %v890 = vmul.f32 %v826, 1.4142135
    %v891 = vmul.f32 %v827, 1.4142135
    %v892 = vmul.f32 %v828, 1.4142135
    %v893 = vmul.f32 %v829, 1.4142135
    %v894 = vmul.f32 %v830, 1.4142135
    %v895 = vmul.f32 %v831, 1.4142135
    %v896 = vmul.f32 %v832, 1.4142135
    %v897 = vmul.f32 %v833, 1.4142135
    %v898 = vmul.f32 %v834, 1.4142135
    %v899 = vmul.f32 %v835, 1.4142135
    %v900 = vmul.f32 %v836, 1.4142135
    %v901 = vmul.f32 %v837, 1.4142135
    %v902 = vmul.f32 %v838, 1.4142135
    %v903 = vmul.f32 %v839, 1.4142135
    %v904 = vmul.f32 %v840, 1.4142135
    %v905 = vmul.f32 %v841, 1.4142135
    %v906 = vmul.f32 %v842, 1.4142135
    %v907 = vmul.f32 %v843, 1.4142135
    %v908 = vmul.f32 %v844, 1.4142135
    %v909 = vmul.f32 %v845, 1.4142135
    %v910 = vmul.f32 %v846, 1.4142135
    %v911 = vmul.f32 %v847, 1.4142135
    %v912 = vmul.f32 %v848, 1.4142135
    %v913 = vmul.f32 %v849, 1.4142135
    %v914 = vmul.f32 %v850, 1.4142135
    %v915 = vmul.f32 %v851, 1.4142135
    %v916 = vpack.c.bf16 %v853, %v852
    %v917 = vpack.c.bf16 %v855, %v854
    %v918 = vpack.c.bf16 %v857, %v856
    %v919 = vpack.c.bf16 %v859, %v858
    %v920 = vpack.c.bf16 %v861, %v860
    %v921 = vpack.c.bf16 %v863, %v862
    %v922 = vpack.c.bf16 %v865, %v864
    %v923 = vpack.c.bf16 %v867, %v866
    %v924 = vpack.c.bf16 %v869, %v868
    %v925 = vpack.c.bf16 %v871, %v870
    %v926 = vpack.c.bf16 %v873, %v872
    %v927 = vpack.c.bf16 %v875, %v874
    %v928 = vpack.c.bf16 %v877, %v876
    %v929 = vpack.c.bf16 %v879, %v878
    %v930 = vpack.c.bf16 %v881, %v880
    %v931 = vpack.c.bf16 %v883, %v882
    %v932 = vpack.c.bf16 %v885, %v884
    %v933 = vpack.c.bf16 %v887, %v886
    %v934 = vpack.c.bf16 %v889, %v888
    %v935 = vpack.c.bf16 %v891, %v890
    %v936 = vpack.c.bf16 %v893, %v892
    %v937 = vpack.c.bf16 %v895, %v894
    %v938 = vpack.c.bf16 %v897, %v896
    %v939 = vpack.c.bf16 %v899, %v898
    %v940 = vpack.c.bf16 %v901, %v900
    %v941 = vpack.c.bf16 %v903, %v902
    %v942 = vpack.c.bf16 %v905, %v904
    %v943 = vpack.c.bf16 %v907, %v906
    %v944 = vpack.c.bf16 %v909, %v908
    %v945 = vpack.c.bf16 %v911, %v910
    %v946 = vpack.c.bf16 %v913, %v912
    %v947 = vpack.c.bf16 %v915, %v914
    %v980 = vunpack.c.l.b16 %v916
    %v981 = vunpack.c.h.b16 %v916
    %v982 = vunpack.c.l.b16 %v917
    %v983 = vunpack.c.h.b16 %v917
    %v984 = vunpack.c.l.b16 %v918
    %v985 = vunpack.c.h.b16 %v918
    %v986 = vunpack.c.l.b16 %v919
    %v987 = vunpack.c.h.b16 %v919
    %v988 = vunpack.c.l.b16 %v920
    %v989 = vunpack.c.h.b16 %v920
    %v990 = vunpack.c.l.b16 %v921
    %v991 = vunpack.c.h.b16 %v921
    %v992 = vunpack.c.l.b16 %v922
    %v993 = vunpack.c.h.b16 %v922
    %v994 = vunpack.c.l.b16 %v923
    %v995 = vunpack.c.h.b16 %v923
    %v996 = vunpack.c.l.b16 %v924
    %v997 = vunpack.c.h.b16 %v924
    %v998 = vunpack.c.l.b16 %v925
    %v999 = vunpack.c.h.b16 %v925
    %v1000 = vunpack.c.l.b16 %v926
    %v1001 = vunpack.c.h.b16 %v926
    %v1002 = vunpack.c.l.b16 %v927
    %v1003 = vunpack.c.h.b16 %v927
    %v1004 = vunpack.c.l.b16 %v928
    %v1005 = vunpack.c.h.b16 %v928
    %v1006 = vunpack.c.l.b16 %v929
    %v1007 = vunpack.c.h.b16 %v929
    %v1008 = vunpack.c.l.b16 %v930
    %v1009 = vunpack.c.h.b16 %v930
    %v1010 = vunpack.c.l.b16 %v931
    %v1011 = vunpack.c.h.b16 %v931
    %v1012 = vunpack.c.l.b16 %v932
    %v1013 = vunpack.c.h.b16 %v932
    %v1014 = vunpack.c.l.b16 %v933
    %v1015 = vunpack.c.h.b16 %v933
    %v1016 = vunpack.c.l.b16 %v934
    %v1017 = vunpack.c.h.b16 %v934
    %v1018 = vunpack.c.l.b16 %v935
    %v1019 = vunpack.c.h.b16 %v935
    %v1020 = vunpack.c.l.b16 %v936
    %v1021 = vunpack.c.h.b16 %v936
    %v1022 = vunpack.c.l.b16 %v937
    %v1023 = vunpack.c.h.b16 %v937
    %v1024 = vunpack.c.l.b16 %v938
    %v1025 = vunpack.c.h.b16 %v938
    %v1026 = vunpack.c.l.b16 %v939
    %v1027 = vunpack.c.h.b16 %v939
    %v1028 = vunpack.c.l.b16 %v940
    %v1029 = vunpack.c.h.b16 %v940
    %v1030 = vunpack.c.l.b16 %v941
    %v1031 = vunpack.c.h.b16 %v941
    %v1032 = vunpack.c.l.b16 %v942
    %v1033 = vunpack.c.h.b16 %v942
    %v1034 = vunpack.c.l.b16 %v943
    %v1035 = vunpack.c.h.b16 %v943
    %v1036 = vunpack.c.l.b16 %v944
    %v1037 = vunpack.c.h.b16 %v944
    %v1038 = vunpack.c.l.b16 %v945
    %v1039 = vunpack.c.h.b16 %v945
    %v1040 = vunpack.c.l.b16 %v946
    %v1041 = vunpack.c.h.b16 %v946
    %v1042 = vunpack.c.l.b16 %v947
    %v1043 = vunpack.c.h.b16 %v947
    %v1044 = vpack.c.b16 %v980, %v980
    %v1045 = vpack.c.b16 %v981, %v981
    %v1046 = vpack.c.b16 %v982, %v982
    %v1047 = vpack.c.b16 %v983, %v983
    %v1048 = vpack.c.b16 %v984, %v984
    %v1049 = vpack.c.b16 %v985, %v985
    %v1050 = vpack.c.b16 %v986, %v986
    %v1051 = vpack.c.b16 %v987, %v987
    %v1052 = vpack.c.b16 %v988, %v988
    %v1053 = vpack.c.b16 %v989, %v989
    %v1054 = vpack.c.b16 %v990, %v990
    %v1055 = vpack.c.b16 %v991, %v991
    %v1056 = vpack.c.b16 %v992, %v992
    %v1057 = vpack.c.b16 %v993, %v993
    %v1058 = vpack.c.b16 %v994, %v994
    %v1059 = vpack.c.b16 %v995, %v995
    %v1060 = vpack.c.b16 %v996, %v996
    %v1061 = vpack.c.b16 %v997, %v997
    %v1062 = vpack.c.b16 %v998, %v998
    %v1063 = vpack.c.b16 %v999, %v999
    %v1064 = vpack.c.b16 %v1000, %v1000
    %v1065 = vpack.c.b16 %v1001, %v1001
    %v1066 = vpack.c.b16 %v1002, %v1002
    %v1067 = vpack.c.b16 %v1003, %v1003
    %v1068 = vpack.c.b16 %v1004, %v1004
    %v1069 = vpack.c.b16 %v1005, %v1005
    %v1070 = vpack.c.b16 %v1006, %v1006
    %v1071 = vpack.c.b16 %v1007, %v1007
    %v1072 = vpack.c.b16 %v1008, %v1008
    %v1073 = vpack.c.b16 %v1009, %v1009
    %v1074 = vpack.c.b16 %v1010, %v1010
    %v1075 = vpack.c.b16 %v1011, %v1011
    %v1076 = vpack.c.b16 %v1012, %v1012
    %v1077 = vpack.c.b16 %v1013, %v1013
    %v1078 = vpack.c.b16 %v1014, %v1014
    %v1079 = vpack.c.b16 %v1015, %v1015
    %v1080 = vpack.c.b16 %v1016, %v1016
    %v1081 = vpack.c.b16 %v1017, %v1017
    %v1082 = vpack.c.b16 %v1018, %v1018
    %v1083 = vpack.c.b16 %v1019, %v1019
    %v1084 = vpack.c.b16 %v1020, %v1020
    %v1085 = vpack.c.b16 %v1021, %v1021
    %v1086 = vpack.c.b16 %v1022, %v1022
    %v1087 = vpack.c.b16 %v1023, %v1023
    %v1088 = vpack.c.b16 %v1024, %v1024
    %v1089 = vpack.c.b16 %v1025, %v1025
    %v1090 = vpack.c.b16 %v1026, %v1026
    %v1091 = vpack.c.b16 %v1027, %v1027
    %v1092 = vpack.c.b16 %v1028, %v1028
    %v1093 = vpack.c.b16 %v1029, %v1029
    %v1094 = vpack.c.b16 %v1030, %v1030
    %v1095 = vpack.c.b16 %v1031, %v1031
    %v1096 = vpack.c.b16 %v1032, %v1032
    %v1097 = vpack.c.b16 %v1033, %v1033
    %v1098 = vpack.c.b16 %v1034, %v1034
    %v1099 = vpack.c.b16 %v1035, %v1035
    %v1100 = vpack.c.b16 %v1036, %v1036
    %v1101 = vpack.c.b16 %v1037, %v1037
    %v1102 = vpack.c.b16 %v1038, %v1038
    %v1103 = vpack.c.b16 %v1039, %v1039
    %v1104 = vpack.c.b16 %v1040, %v1040
    %v1105 = vpack.c.b16 %v1041, %v1041
    %v1106 = vpack.c.b16 %v1042, %v1042
    %v1107 = vpack.c.b16 %v1043, %v1043
    %1172 = vst [vmem:[#allocation7] sm:$0xf] %v1044
    %1173 = vst [vmem:[#allocation7 + $0x4] sm:$0xf] %v1045
    %1174 = vst [vmem:[#allocation7 + $0x8] sm:$0xf] %v1046
    %1175 = vst [vmem:[#allocation7 + $0xc] sm:$0xf] %v1047
    %1176 = vst [vmem:[#allocation7 + $0x10] sm:$0xf] %v1048
    %1177 = vst [vmem:[#allocation7 + $0x14] sm:$0xf] %v1049
    %1178 = vst [vmem:[#allocation7 + $0x18] sm:$0xf] %v1050
    %1179 = vst [vmem:[#allocation7 + $0x1c] sm:$0xf] %v1051
    %1180 = vst [vmem:[#allocation7 + $0x20] sm:$0xf] %v1052
    %1181 = vst [vmem:[#allocation7 + $0x24] sm:$0xf] %v1053
    %1182 = vst [vmem:[#allocation7 + $0x28] sm:$0xf] %v1054
    %1183 = vst [vmem:[#allocation7 + $0x2c] sm:$0xf] %v1055
    %1184 = vst [vmem:[#allocation7 + $0x30] sm:$0xf] %v1056
    %1185 = vst [vmem:[#allocation7 + $0x34] sm:$0xf] %v1057
    %1186 = vst [vmem:[#allocation7 + $0x38] sm:$0xf] %v1058
    %1187 = vst [vmem:[#allocation7 + $0x3c] sm:$0xf] %v1059
    %1188 = vst [vmem:[#allocation7 + $0x40] sm:$0xf] %v1060
    %1189 = vst [vmem:[#allocation7 + $0x44] sm:$0xf] %v1061
    %1190 = vst [vmem:[#allocation7 + $0x48] sm:$0xf] %v1062
    %1191 = vst [vmem:[#allocation7 + $0x4c] sm:$0xf] %v1063
    %1192 = vst [vmem:[#allocation7 + $0x50] sm:$0xf] %v1064
    %1193 = vst [vmem:[#allocation7 + $0x54] sm:$0xf] %v1065
    %1194 = vst [vmem:[#allocation7 + $0x58] sm:$0xf] %v1066
    %1195 = vst [vmem:[#allocation7 + $0x5c] sm:$0xf] %v1067
    %1196 = vst [vmem:[#allocation7 + $0x60] sm:$0xf] %v1068
    %1197 = vst [vmem:[#allocation7 + $0x64] sm:$0xf] %v1069
    %1198 = vst [vmem:[#allocation7 + $0x68] sm:$0xf] %v1070
    %1199 = vst [vmem:[#allocation7 + $0x6c] sm:$0xf] %v1071
    %1200 = vst [vmem:[#allocation7 + $0x70] sm:$0xf] %v1072
    %1201 = vst [vmem:[#allocation7 + $0x74] sm:$0xf] %v1073
    %1202 = vst [vmem:[#allocation7 + $0x78] sm:$0xf] %v1074
    %1203 = vst [vmem:[#allocation7 + $0x7c] sm:$0xf] %v1075
    %1204 = vst [vmem:[#allocation7 + $0x80] sm:$0xf] %v1076
    %1205 = vst [vmem:[#allocation7 + $0x84] sm:$0xf] %v1077
    %1206 = vst [vmem:[#allocation7 + $0x88] sm:$0xf] %v1078
    %1207 = vst [vmem:[#allocation7 + $0x8c] sm:$0xf] %v1079
    %1208 = vst [vmem:[#allocation7 + $0x90] sm:$0xf] %v1080
    %1209 = vst [vmem:[#allocation7 + $0x94] sm:$0xf] %v1081
    %1210 = vst [vmem:[#allocation7 + $0x98] sm:$0xf] %v1082
    %1211 = vst [vmem:[#allocation7 + $0x9c] sm:$0xf] %v1083
    %1212 = vst [vmem:[#allocation7 + $0xa0] sm:$0xf] %v1084
    %1213 = vst [vmem:[#allocation7 + $0xa4] sm:$0xf] %v1085
    %1214 = vst [vmem:[#allocation7 + $0xa8] sm:$0xf] %v1086
    %1215 = vst [vmem:[#allocation7 + $0xac] sm:$0xf] %v1087
    %1216 = vst [vmem:[#allocation7 + $0xb0] sm:$0xf] %v1088
    %1217 = vst [vmem:[#allocation7 + $0xb4] sm:$0xf] %v1089
    %1218 = vst [vmem:[#allocation7 + $0xb8] sm:$0xf] %v1090
    %1219 = vst [vmem:[#allocation7 + $0xbc] sm:$0xf] %v1091
    %1220 = vst [vmem:[#allocation7 + $0xc0] sm:$0xf] %v1092
    %1221 = vst [vmem:[#allocation7 + $0xc4] sm:$0xf] %v1093
    %1222 = vst [vmem:[#allocation7 + $0xc8] sm:$0xf] %v1094
    %1223 = vst [vmem:[#allocation7 + $0xcc] sm:$0xf] %v1095
    %1224 = vst [vmem:[#allocation7 + $0xd0] sm:$0xf] %v1096
    %1225 = vst [vmem:[#allocation7 + $0xd4] sm:$0xf] %v1097
    %1226 = vst [vmem:[#allocation7 + $0xd8] sm:$0xf] %v1098
    %1227 = vst [vmem:[#allocation7 + $0xdc] sm:$0xf] %v1099
    %1228 = vst [vmem:[#allocation7 + $0xe0] sm:$0xf] %v1100
    %1229 = vst [vmem:[#allocation7 + $0xe4] sm:$0xf] %v1101
    %1230 = vst [vmem:[#allocation7 + $0xe8] sm:$0xf] %v1102
    %1231 = vst [vmem:[#allocation7 + $0xec] sm:$0xf] %v1103
    %1232 = vst [vmem:[#allocation7 + $0xf0] sm:$0xf] %v1104
    %1233 = vst [vmem:[#allocation7 + $0xf4] sm:$0xf] %v1105
    %1234 = vst [vmem:[#allocation7 + $0xf8] sm:$0xf] %v1106
    %1235 = vst [vmem:[#allocation7 + $0xfc] sm:$0xf] %v1107
    // Predicated region
    $region22: #{tpu_custom_call.1} parent=1 // pred_check
      _
    $region23: #{tpu_custom_call.1} parent=1 // pred_check_branch
      %1237 = sbr.rel (0) target = $region25
    $region24: #{tpu_custom_call.1} parent=1 // pred_region
      %s1239 = ssub.s32 4096, 4096
      %1240 = vsyncadd [#allocation4], %s1239
      %s1241 = sshll.u32 [#allocation7], 4
      %s1242 = int_to_ptr.vmem [resolvable:$true] %s1241
      %1247 = dma.vmem_to_hbm [thread:$0]  %s1242, 4096, %s3, [#allocation4], 64, 64, 4
    $region25: #{tpu_custom_call.1} parent=1 // pred_fallthru
      _
    // Predicated region
    $region26: #{tpu_custom_call.1} parent=1 // pred_check
      _
    $region27: #{tpu_custom_call.1} parent=1 // pred_check_branch
      %1249 = sbr.rel (0) target = $region29
    $region28: #{tpu_custom_call.1} parent=1 // pred_region
      %1250 = dma.done [#allocation4], 4096
    $region29: #{tpu_custom_call.1} parent=1 // pred_fallthru
      _
    %1251 = vsyncpa [#allocation3], 1
    %1252 = vsyncpa [#allocation6], 1
    %1253 = vsyncpa [#allocation4], 1

</llo_original>
